<compile_context>
chip_gen: v5e
topology: v5e:2x2
jax: 0.10.0
libtpu: 0.0.40
codegen_flags: <defaults>
</compile_context>

<pallas_src>
import functools
import math

import jax
import jax.numpy as jnp
from jax import lax
from jax.experimental import pallas as pl
from jax.experimental.pallas import tpu as pltpu

COMPUTE_DTYPE = jnp.bfloat16   # MXU input dtype; accumulation is always f32


def _round_up(x, m):
    return (x + m - 1) // m * m


# ----------------------------------------------------------------------------
# Tiled matmul + bias (+ optional ReLU) kernel — used for the final Linear.
# ----------------------------------------------------------------------------
def _matmul_bias_kernel(x_ref, w_ref, b_ref, o_ref, acc_ref, *, relu):
    @pl.when(pl.program_id(2) == 0)
    def _init():
        acc_ref[...] = jnp.zeros_like(acc_ref)

    acc_ref[...] += jnp.dot(x_ref[...], w_ref[...],
                            preferred_element_type=jnp.float32)

    @pl.when(pl.program_id(2) == pl.num_programs(2) - 1)
    def _finalize():
        out = acc_ref[...] + b_ref[...]          # bias only once, at K finalize
        if relu:
            out = jnp.maximum(out, 0.0)
        o_ref[...] = out.astype(o_ref.dtype)


def matmul_bias(x, w, b, *, relu=False, out_dtype=jnp.float32,
                compute_dtype=COMPUTE_DTYPE, tm=256, tn=256, tk=512):
    """(M,K) @ (K,N) + b with a real (M,N,K) grid, f32 VMEM accumulator."""
    M, K = x.shape
    K2, N = w.shape
    assert K == K2
    # tile sizes: multiples of (8, 128) so BlockSpecs are always legal
    tm = min(tm, _round_up(M, 8))
    tn = min(tn, _round_up(N, 128))
    tk = min(tk, _round_up(K, 128))
    Mp, Kp, Np = _round_up(M, tm), _round_up(K, tk), _round_up(N, tn)

    xp = jnp.pad(x.astype(compute_dtype), ((0, Mp - M), (0, Kp - K)))
    wp = jnp.pad(w.astype(compute_dtype), ((0, Kp - K), (0, Np - N)))
    bp = jnp.pad(b.astype(jnp.float32), (0, Np - N)).reshape(1, Np)

    grid = (Mp // tm, Np // tn, Kp // tk)
    out = pl.pallas_call(
        functools.partial(_matmul_bias_kernel, relu=relu),
        out_shape=jax.ShapeDtypeStruct((Mp, Np), out_dtype),
        grid=grid,
        in_specs=[
            pl.BlockSpec((tm, tk), lambda i, j, kk: (i, kk)),
            pl.BlockSpec((tk, tn), lambda i, j, kk: (kk, j)),
            pl.BlockSpec((1, tn), lambda i, j, kk: (0, j)),
        ],
        out_specs=pl.BlockSpec((tm, tn), lambda i, j, kk: (i, j)),
        scratch_shapes=[pltpu.VMEM((tm, tn), jnp.float32)],
        compiler_params=pltpu.CompilerParams(
            dimension_semantics=("parallel", "parallel", "arbitrary")),
        cost_estimate=pl.CostEstimate(
            flops=2 * Mp * Np * Kp,
            transcendentals=0,
            bytes_accessed=(Mp * Kp + Kp * Np) * 2 + Mp * Np * 4 + Np * 4),
    )(xp, wp, bp)
    return out[:M, :N]


# ----------------------------------------------------------------------------
# Fused 3x3 / stride-2 conv + bias + ReLU kernel on parity-split NHWC input.
# ----------------------------------------------------------------------------
def _conv3x3_s2_kernel(x_ref, w_ref, b_ref, o_ref, *, k, Ho, Wo):
    """x_ref: (4, Hh, Wh, Cin) parity planes (bf16)
       w_ref: (k*k, Cin, Cout) per-tap matmul weights (bf16)
       b_ref: (1, Cout) bias (f32)
       o_ref: (Ho, Wo, Cout) channels-last output (bf16)"""
    cin = x_ref.shape[-1]
    cout = o_ref.shape[-1]
    planes = [x_ref[i] for i in range(4)]           # loaded once, reused by all taps
    acc = jnp.zeros((Ho * Wo, cout), jnp.float32)
    t = 0
    for kh in range(k):
        for kw in range(k):
            pidx = (kh % 2) * 2 + (kw % 2)          # parity plane for this tap
            dr, dc = kh // 2, kw // 2               # unit-stride shift in half-res grid
            xt = planes[pidx][dr:dr + Ho, dc:dc + Wo, :].reshape(Ho * Wo, cin)
            w_t = w_ref[t]                           # (Cin, Cout), static index
            if cin == 1:
                # First layer: K == 1 — a VPU broadcast-FMA beats a degenerate
                # MXU contraction over 1 of 128/256 systolic rows.
                acc = acc + xt.astype(jnp.float32) * w_t.astype(jnp.float32)
            else:
                acc = acc + jnp.dot(xt, w_t, preferred_element_type=jnp.float32)
            t += 1
    acc = jnp.maximum(acc + b_ref[...], 0.0)         # fused bias + ReLU (f32 epilogue)
    o_ref[...] = acc.reshape(Ho, Wo, cout).astype(o_ref.dtype)


def conv2d_relu(x, w_taps, b, *, k, stride, pad):
    """One Conv2d(3x3, stride 2, pad 1) + bias + ReLU layer, channels-last."""
    assert stride == 2 and k == 3, "parity-plane kernel assumes the module's 3x3/stride-2 conv"
    # TODO(synk): for very long sequences, tile the time axis with manual halo DMA
    # (P4) instead of one batch element per grid step.
    B, H, W, Cin = x.shape
    Cout = w_taps.shape[-1]
    Ho = (H + 2 * pad - k) // stride + 1
    Wo = (W + 2 * pad - k) // stride + 1
    Hh, Wh = Ho + 1, Wo + 1                          # half-res extents incl. +1 tap halo
    Hp, Wp = 2 * Hh, 2 * Wh

    # Zero-pad + parity split (space-to-depth by the stride).  Same total bytes
    # as the padded input — unlike im2col there is no k*k duplication in HBM,
    # and every in-kernel tap access becomes a unit-stride slice.
    xp = jnp.pad(x, ((0, 0), (pad, Hp - H - pad), (pad, Wp - W - pad), (0, 0)))
    planes = (xp.reshape(B, Hh, 2, Wh, 2, Cin)
                .transpose(0, 2, 4, 1, 3, 5)
                .reshape(B, 4, Hh, Wh, Cin))

    return pl.pallas_call(
        functools.partial(_conv3x3_s2_kernel, k=k, Ho=Ho, Wo=Wo),
        out_shape=jax.ShapeDtypeStruct((B, Ho, Wo, Cout), x.dtype),
        grid=(B,),
        in_specs=[
            pl.BlockSpec((None, 4, Hh, Wh, Cin), lambda i: (i, 0, 0, 0, 0)),
            pl.BlockSpec((k * k, Cin, Cout), lambda i: (0, 0, 0)),
            pl.BlockSpec((1, Cout), lambda i: (0, 0)),
        ],
        out_specs=pl.BlockSpec((None, Ho, Wo, Cout), lambda i: (i, 0, 0, 0)),
        compiler_params=pltpu.CompilerParams(dimension_semantics=("parallel",)),
    )(planes, w_taps, b.reshape(1, Cout).astype(jnp.float32))


# ----------------------------------------------------------------------------
# Plain-JAX glue: length arithmetic + parameter init (weights pre-laid-out).
# ----------------------------------------------------------------------------
def calc_length_jax(lengths, padding, kernel_size, stride, ceil_mode, repeat_num):
    add_pad = float(padding * 2 - kernel_size)
    l = lengths.astype(jnp.float32)
    for _ in range(repeat_num):
        l = (l + add_pad) / float(stride) + 1.0
        l = jnp.ceil(l) if ceil_mode else jnp.floor(l)
    return l.astype(jnp.int32)


def init_conv_subsampling(key, *, input_dim, feat_out, conv_channels,
                          subsampling_factor=4, kernel_size=3, stride=2, padding=1,
                          compute_dtype=COMPUTE_DTYPE):
    if subsampling_factor % 2 != 0:
        raise ValueError("Sampling factor should be a multiply of 2!")
    sampling_num = int(math.log(subsampling_factor, 2))
    keys = jax.random.split(key, sampling_num * 2 + 2)

    convs_ref, convs_mm = [], []
    in_ch = 1
    out_len = float(input_dim)
    for i in range(sampling_num):
        w = 0.1 * jax.random.normal(
            keys[2 * i], (conv_channels, in_ch, kernel_size, kernel_size), jnp.float32)
        b = 0.1 * jax.random.normal(keys[2 * i + 1], (conv_channels,), jnp.float32)
        convs_ref.append((w, b))                     # torch OIHW layout (reference path)
        # pre-reshape to (k*k, Cin, Cout) matmul taps, pre-cast to the MXU dtype
        w_taps = (w.transpose(2, 3, 1, 0)
                   .reshape(kernel_size * kernel_size, in_ch, conv_channels)
                   .astype(compute_dtype))
        convs_mm.append((w_taps, b))
        in_ch = conv_channels
        out_len = math.floor((out_len + 2 * padding - kernel_size) / stride + 1.0)

    f_out = int(out_len)                             # conv-output frequency size
    lin_in = conv_channels * f_out
    out_w = 0.1 * jax.random.normal(keys[-2], (feat_out, lin_in), jnp.float32)  # torch (N, C*F')
    out_b = 0.1 * jax.random.normal(keys[-1], (feat_out,), jnp.float32)
    # Pre-permute ONCE at init: kernel path flattens NHWC as (F', C); torch flattens (C, F').
    out_w_mm = (out_w.reshape(feat_out, conv_channels, f_out)
                     .transpose(2, 1, 0)
                     .reshape(f_out * conv_channels, feat_out)
                     .astype(compute_dtype))
    return {
        "convs_ref": convs_ref, "convs_mm": convs_mm,
        "out_w_ref": out_w, "out_w_mm": out_w_mm, "out_b": out_b,
        "compute_dtype": compute_dtype,
        "hparams": dict(kernel_size=kernel_size, stride=stride, padding=padding,
                        sampling_num=sampling_num),
    }


def conv_subsampling_forward(params, x, lengths):
    hp = params["hparams"]
    k, s, p, n = hp["kernel_size"], hp["stride"], hp["padding"], hp["sampling_num"]
    cdt = params["compute_dtype"]

    out_lengths = calc_length_jax(lengths, padding=p, kernel_size=k, stride=s,
                                  ceil_mode=False, repeat_num=n)

    B, T, F = x.shape
    h = x.astype(cdt).reshape(B, T, F, 1)            # unsqueeze(1) -> NHWC with C=1
    for (w_taps, b) in params["convs_mm"]:
        h = conv2d_relu(h, w_taps, b, k=k, stride=s, pad=p)   # (B, T', F', C) channels-last
    B_, Tp, Fp, C = h.shape
    flat = h.reshape(B_ * Tp, Fp * C)                # no transpose — weight pre-permuted
    out = matmul_bias(flat, params["out_w_mm"], params["out_b"],
                      relu=False, out_dtype=jnp.float32, compute_dtype=cdt)
    return out.reshape(B_, Tp, -1), out_lengths


# ----------------------------------------------------------------------------
# Pure-JAX reference (torch-equivalent NCHW path) for the correctness check.
# ----------------------------------------------------------------------------
def _reference_forward(params, x, lengths):
    hp = params["hparams"]
    k, s, p, n = hp["kernel_size"], hp["stride"], hp["padding"], hp["sampling_num"]
    cdt = params["compute_dtype"]
    out_lengths = calc_length_jax(lengths, padding=p, kernel_size=k, stride=s,
                                  ceil_mode=False, repeat_num=n)
    B, T, F = x.shape
    h = x.astype(cdt).reshape(B, 1, T, F)            # NCHW like torch
    for (w, b) in params["convs_ref"]:
        h = lax.conv_general_dilated(
            h, w.astype(cdt), window_strides=(s, s), padding=((p, p), (p, p)),
            dimension_numbers=("NCHW", "OIHW", "NCHW"),
            preferred_element_type=jnp.float32)
        h = jnp.maximum(h + b[None, :, None, None], 0.0).astype(cdt)
    B_, C, Tp, Fp = h.shape
    flat = h.transpose(0, 2, 1, 3).reshape(B_ * Tp, C * Fp)    # torch (C, F') flatten
    out = (jnp.dot(flat, params["out_w_ref"].T.astype(cdt),
                   preferred_element_type=jnp.float32) + params["out_b"])
    return out.reshape(B_, Tp, -1), out_lengths


if __name__ == "__main__":
    key = jax.random.PRNGKey(0)
    k_param, k_x = jax.random.split(key)

    # Small shapes consistent with the module: (B, T, input_dim)
    B, T, input_dim = 2, 16, 16
    conv_channels, feat_out, subsampling_factor = 8, 32, 4

    params = init_conv_subsampling(
        k_param, input_dim=input_dim, feat_out=feat_out,
        conv_channels=conv_channels, subsampling_factor=subsampling_factor)

    x = jax.random.normal(k_x, (B, T, input_dim), jnp.float32)
    lengths = jnp.array([16, 12], dtype=jnp.int32)

    out, out_lengths = conv_subsampling_forward(params, x, lengths)
    out = jax.block_until_ready(out)
    out_lengths = jax.block_until_ready(out_lengths)

    ref_out, ref_len = _reference_forward(params, x, lengths)
    assert out.shape == (B, T // subsampling_factor, feat_out), out.shape
    assert jnp.allclose(out, ref_out, rtol=2e-2, atol=2e-3), \
        float(jnp.max(jnp.abs(out - ref_out)))
    assert jnp.array_equal(out_lengths, ref_len)

    print("KERNEL_OK")
</pallas_src>

<mosaic_0001>
module attributes {stable_mosaic.version = 11 : i64} {
  func.func @_conv3x3_s2_kernel(%arg0: i32, %arg1: memref<1x4x9x9x1xbf16, #tpu.memory_space<vmem>>, %arg2: memref<9x1x8xbf16, #tpu.memory_space<vmem>>, %arg3: memref<1x8xf32, #tpu.memory_space<vmem>>, %arg4: memref<1x8x8x8xbf16, #tpu.memory_space<vmem>>) attributes {dimension_semantics = [#tpu.dimension_semantics<parallel>], iteration_bounds = array<i64: 2>, scalar_prefetch = 0 : i64, scratch_operands = 0 : i64, tpu.core_type = #tpu.core_type<tc>, window_params = [{transform_indices = @transform_0, window_bounds = array<i64: 1, 4, 9, 9, 1>}, {pipeline_mode = #tpu.pipeline_mode<synchronous>, transform_indices = @transform_1, window_bounds = array<i64: 9, 1, 8>}, {pipeline_mode = #tpu.pipeline_mode<synchronous>, transform_indices = @transform_2, window_bounds = array<i64: 1, 8>}, {transform_indices = @transform_3, window_bounds = array<i64: 1, 8, 8, 8>}]} {
    %c0 = arith.constant 0 : index
    %c0_0 = arith.constant 0 : index
    %c0_1 = arith.constant 0 : index
    %c0_2 = arith.constant 0 : index
    %c0_3 = arith.constant 0 : index
    %0 = vector.load %arg1[%c0, %c0_0, %c0_1, %c0_2, %c0_3] : memref<1x4x9x9x1xbf16, #tpu.memory_space<vmem>>, vector<1x1x9x9x1xbf16>
    %1 = vector.shape_cast %0 : vector<1x1x9x9x1xbf16> to vector<9x9x1xbf16>
    %c0_4 = arith.constant 0 : index
    %c1 = arith.constant 1 : index
    %c0_5 = arith.constant 0 : index
    %c0_6 = arith.constant 0 : index
    %c0_7 = arith.constant 0 : index
    %2 = vector.load %arg1[%c0_4, %c1, %c0_5, %c0_6, %c0_7] : memref<1x4x9x9x1xbf16, #tpu.memory_space<vmem>>, vector<1x1x9x9x1xbf16>
    %3 = vector.shape_cast %2 : vector<1x1x9x9x1xbf16> to vector<9x9x1xbf16>
    %c0_8 = arith.constant 0 : index
    %c2 = arith.constant 2 : index
    %c0_9 = arith.constant 0 : index
    %c0_10 = arith.constant 0 : index
    %c0_11 = arith.constant 0 : index
    %4 = vector.load %arg1[%c0_8, %c2, %c0_9, %c0_10, %c0_11] : memref<1x4x9x9x1xbf16, #tpu.memory_space<vmem>>, vector<1x1x9x9x1xbf16>
    %5 = vector.shape_cast %4 : vector<1x1x9x9x1xbf16> to vector<9x9x1xbf16>
    %c0_12 = arith.constant 0 : index
    %c3 = arith.constant 3 : index
    %c0_13 = arith.constant 0 : index
    %c0_14 = arith.constant 0 : index
    %c0_15 = arith.constant 0 : index
    %6 = vector.load %arg1[%c0_12, %c3, %c0_13, %c0_14, %c0_15] : memref<1x4x9x9x1xbf16, #tpu.memory_space<vmem>>, vector<1x1x9x9x1xbf16>
    %7 = vector.shape_cast %6 : vector<1x1x9x9x1xbf16> to vector<9x9x1xbf16>
    %cst = arith.constant 0.000000e+00 : f32
    %8 = vector.broadcast %cst : f32 to vector<64x8xf32>
    %9 = vector.extract_strided_slice %1 {offsets = [0, 0, 0], sizes = [8, 8, 1], strides = [1, 1, 1]} : vector<9x9x1xbf16> to vector<8x8x1xbf16>
    %10 = vector.shape_cast %9 : vector<8x8x1xbf16> to vector<64x1xbf16>
    %c0_16 = arith.constant 0 : index
    %c0_17 = arith.constant 0 : index
    %c0_18 = arith.constant 0 : index
    %11 = vector.load %arg2[%c0_16, %c0_17, %c0_18] : memref<9x1x8xbf16, #tpu.memory_space<vmem>>, vector<1x1x8xbf16>
    %12 = vector.shape_cast %11 : vector<1x1x8xbf16> to vector<1x8xbf16>
    %13 = arith.extf %10 : vector<64x1xbf16> to vector<64x1xf32>
    %14 = arith.extf %12 : vector<1x8xbf16> to vector<1x8xf32>
    %15 = vector.broadcast %13 : vector<64x1xf32> to vector<64x8xf32>
    %16 = vector.broadcast %14 : vector<1x8xf32> to vector<64x8xf32>
    %17 = arith.mulf %15, %16 : vector<64x8xf32>
    %18 = arith.addf %8, %17 : vector<64x8xf32>
    %19 = vector.extract_strided_slice %3 {offsets = [0, 0, 0], sizes = [8, 8, 1], strides = [1, 1, 1]} : vector<9x9x1xbf16> to vector<8x8x1xbf16>
    %20 = vector.shape_cast %19 : vector<8x8x1xbf16> to vector<64x1xbf16>
    %c1_19 = arith.constant 1 : index
    %c0_20 = arith.constant 0 : index
    %c0_21 = arith.constant 0 : index
    %21 = vector.load %arg2[%c1_19, %c0_20, %c0_21] : memref<9x1x8xbf16, #tpu.memory_space<vmem>>, vector<1x1x8xbf16>
    %22 = vector.shape_cast %21 : vector<1x1x8xbf16> to vector<1x8xbf16>
    %23 = arith.extf %20 : vector<64x1xbf16> to vector<64x1xf32>
    %24 = arith.extf %22 : vector<1x8xbf16> to vector<1x8xf32>
    %25 = vector.broadcast %23 : vector<64x1xf32> to vector<64x8xf32>
    %26 = vector.broadcast %24 : vector<1x8xf32> to vector<64x8xf32>
    %27 = arith.mulf %25, %26 : vector<64x8xf32>
    %28 = arith.addf %18, %27 : vector<64x8xf32>
    %29 = vector.extract_strided_slice %1 {offsets = [0, 1, 0], sizes = [8, 8, 1], strides = [1, 1, 1]} : vector<9x9x1xbf16> to vector<8x8x1xbf16>
    %30 = vector.shape_cast %29 : vector<8x8x1xbf16> to vector<64x1xbf16>
    %c2_22 = arith.constant 2 : index
    %c0_23 = arith.constant 0 : index
    %c0_24 = arith.constant 0 : index
    %31 = vector.load %arg2[%c2_22, %c0_23, %c0_24] : memref<9x1x8xbf16, #tpu.memory_space<vmem>>, vector<1x1x8xbf16>
    %32 = vector.shape_cast %31 : vector<1x1x8xbf16> to vector<1x8xbf16>
    %33 = arith.extf %30 : vector<64x1xbf16> to vector<64x1xf32>
    %34 = arith.extf %32 : vector<1x8xbf16> to vector<1x8xf32>
    %35 = vector.broadcast %33 : vector<64x1xf32> to vector<64x8xf32>
    %36 = vector.broadcast %34 : vector<1x8xf32> to vector<64x8xf32>
    %37 = arith.mulf %35, %36 : vector<64x8xf32>
    %38 = arith.addf %28, %37 : vector<64x8xf32>
    %39 = vector.extract_strided_slice %5 {offsets = [0, 0, 0], sizes = [8, 8, 1], strides = [1, 1, 1]} : vector<9x9x1xbf16> to vector<8x8x1xbf16>
    %40 = vector.shape_cast %39 : vector<8x8x1xbf16> to vector<64x1xbf16>
    %c3_25 = arith.constant 3 : index
    %c0_26 = arith.constant 0 : index
    %c0_27 = arith.constant 0 : index
    %41 = vector.load %arg2[%c3_25, %c0_26, %c0_27] : memref<9x1x8xbf16, #tpu.memory_space<vmem>>, vector<1x1x8xbf16>
    %42 = vector.shape_cast %41 : vector<1x1x8xbf16> to vector<1x8xbf16>
    %43 = arith.extf %40 : vector<64x1xbf16> to vector<64x1xf32>
    %44 = arith.extf %42 : vector<1x8xbf16> to vector<1x8xf32>
    %45 = vector.broadcast %43 : vector<64x1xf32> to vector<64x8xf32>
    %46 = vector.broadcast %44 : vector<1x8xf32> to vector<64x8xf32>
    %47 = arith.mulf %45, %46 : vector<64x8xf32>
    %48 = arith.addf %38, %47 : vector<64x8xf32>
    %49 = vector.extract_strided_slice %7 {offsets = [0, 0, 0], sizes = [8, 8, 1], strides = [1, 1, 1]} : vector<9x9x1xbf16> to vector<8x8x1xbf16>
    %50 = vector.shape_cast %49 : vector<8x8x1xbf16> to vector<64x1xbf16>
    %c4 = arith.constant 4 : index
    %c0_28 = arith.constant 0 : index
    %c0_29 = arith.constant 0 : index
    %51 = vector.load %arg2[%c4, %c0_28, %c0_29] : memref<9x1x8xbf16, #tpu.memory_space<vmem>>, vector<1x1x8xbf16>
    %52 = vector.shape_cast %51 : vector<1x1x8xbf16> to vector<1x8xbf16>
    %53 = arith.extf %50 : vector<64x1xbf16> to vector<64x1xf32>
    %54 = arith.extf %52 : vector<1x8xbf16> to vector<1x8xf32>
    %55 = vector.broadcast %53 : vector<64x1xf32> to vector<64x8xf32>
    %56 = vector.broadcast %54 : vector<1x8xf32> to vector<64x8xf32>
    %57 = arith.mulf %55, %56 : vector<64x8xf32>
    %58 = arith.addf %48, %57 : vector<64x8xf32>
    %59 = vector.extract_strided_slice %5 {offsets = [0, 1, 0], sizes = [8, 8, 1], strides = [1, 1, 1]} : vector<9x9x1xbf16> to vector<8x8x1xbf16>
    %60 = vector.shape_cast %59 : vector<8x8x1xbf16> to vector<64x1xbf16>
    %c5 = arith.constant 5 : index
    %c0_30 = arith.constant 0 : index
    %c0_31 = arith.constant 0 : index
    %61 = vector.load %arg2[%c5, %c0_30, %c0_31] : memref<9x1x8xbf16, #tpu.memory_space<vmem>>, vector<1x1x8xbf16>
    %62 = vector.shape_cast %61 : vector<1x1x8xbf16> to vector<1x8xbf16>
    %63 = arith.extf %60 : vector<64x1xbf16> to vector<64x1xf32>
    %64 = arith.extf %62 : vector<1x8xbf16> to vector<1x8xf32>
    %65 = vector.broadcast %63 : vector<64x1xf32> to vector<64x8xf32>
    %66 = vector.broadcast %64 : vector<1x8xf32> to vector<64x8xf32>
    %67 = arith.mulf %65, %66 : vector<64x8xf32>
    %68 = arith.addf %58, %67 : vector<64x8xf32>
    %69 = vector.extract_strided_slice %1 {offsets = [1, 0, 0], sizes = [8, 8, 1], strides = [1, 1, 1]} : vector<9x9x1xbf16> to vector<8x8x1xbf16>
    %70 = vector.shape_cast %69 : vector<8x8x1xbf16> to vector<64x1xbf16>
    %c6 = arith.constant 6 : index
    %c0_32 = arith.constant 0 : index
    %c0_33 = arith.constant 0 : index
    %71 = vector.load %arg2[%c6, %c0_32, %c0_33] : memref<9x1x8xbf16, #tpu.memory_space<vmem>>, vector<1x1x8xbf16>
    %72 = vector.shape_cast %71 : vector<1x1x8xbf16> to vector<1x8xbf16>
    %73 = arith.extf %70 : vector<64x1xbf16> to vector<64x1xf32>
    %74 = arith.extf %72 : vector<1x8xbf16> to vector<1x8xf32>
    %75 = vector.broadcast %73 : vector<64x1xf32> to vector<64x8xf32>
    %76 = vector.broadcast %74 : vector<1x8xf32> to vector<64x8xf32>
    %77 = arith.mulf %75, %76 : vector<64x8xf32>
    %78 = arith.addf %68, %77 : vector<64x8xf32>
    %79 = vector.extract_strided_slice %3 {offsets = [1, 0, 0], sizes = [8, 8, 1], strides = [1, 1, 1]} : vector<9x9x1xbf16> to vector<8x8x1xbf16>
    %80 = vector.shape_cast %79 : vector<8x8x1xbf16> to vector<64x1xbf16>
    %c7 = arith.constant 7 : index
    %c0_34 = arith.constant 0 : index
    %c0_35 = arith.constant 0 : index
    %81 = vector.load %arg2[%c7, %c0_34, %c0_35] : memref<9x1x8xbf16, #tpu.memory_space<vmem>>, vector<1x1x8xbf16>
    %82 = vector.shape_cast %81 : vector<1x1x8xbf16> to vector<1x8xbf16>
    %83 = arith.extf %80 : vector<64x1xbf16> to vector<64x1xf32>
    %84 = arith.extf %82 : vector<1x8xbf16> to vector<1x8xf32>
    %85 = vector.broadcast %83 : vector<64x1xf32> to vector<64x8xf32>
    %86 = vector.broadcast %84 : vector<1x8xf32> to vector<64x8xf32>
    %87 = arith.mulf %85, %86 : vector<64x8xf32>
    %88 = arith.addf %78, %87 : vector<64x8xf32>
    %89 = vector.extract_strided_slice %1 {offsets = [1, 1, 0], sizes = [8, 8, 1], strides = [1, 1, 1]} : vector<9x9x1xbf16> to vector<8x8x1xbf16>
    %90 = vector.shape_cast %89 : vector<8x8x1xbf16> to vector<64x1xbf16>
    %c8 = arith.constant 8 : index
    %c0_36 = arith.constant 0 : index
    %c0_37 = arith.constant 0 : index
    %91 = vector.load %arg2[%c8, %c0_36, %c0_37] : memref<9x1x8xbf16, #tpu.memory_space<vmem>>, vector<1x1x8xbf16>
    %92 = vector.shape_cast %91 : vector<1x1x8xbf16> to vector<1x8xbf16>
    %93 = arith.extf %90 : vector<64x1xbf16> to vector<64x1xf32>
    %94 = arith.extf %92 : vector<1x8xbf16> to vector<1x8xf32>
    %95 = vector.broadcast %93 : vector<64x1xf32> to vector<64x8xf32>
    %96 = vector.broadcast %94 : vector<1x8xf32> to vector<64x8xf32>
    %97 = arith.mulf %95, %96 : vector<64x8xf32>
    %98 = arith.addf %88, %97 : vector<64x8xf32>
    %c0_38 = arith.constant 0 : index
    %c0_39 = arith.constant 0 : index
    %99 = vector.load %arg3[%c0_38, %c0_39] : memref<1x8xf32, #tpu.memory_space<vmem>>, vector<1x8xf32>
    %100 = vector.broadcast %99 : vector<1x8xf32> to vector<64x8xf32>
    %101 = arith.addf %98, %100 : vector<64x8xf32>
    %cst_40 = arith.constant 0.000000e+00 : f32
    %102 = vector.broadcast %cst_40 : f32 to vector<64x8xf32>
    %103 = arith.maximumf %101, %102 : vector<64x8xf32>
    %104 = vector.shape_cast %103 : vector<64x8xf32> to vector<8x8x8xf32>
    %105 = arith.truncf %104 : vector<8x8x8xf32> to vector<8x8x8xbf16>
    %c0_41 = arith.constant 0 : index
    %c0_42 = arith.constant 0 : index
    %c0_43 = arith.constant 0 : index
    %c0_44 = arith.constant 0 : index
    %106 = vector.load %arg4[%c0_41, %c0_42, %c0_43, %c0_44] : memref<1x8x8x8xbf16, #tpu.memory_space<vmem>>, vector<1x8x8x8xbf16>
    %107 = vector.shape_cast %106 : vector<1x8x8x8xbf16> to vector<8x8x8xbf16>
    %108 = vector.shape_cast %105 : vector<8x8x8xbf16> to vector<1x8x8x8xbf16>
    tpu.vector_store %arg4[%c0_41, %c0_42, %c0_43, %c0_44], %108 {strides = array<i32>} : memref<1x8x8x8xbf16, #tpu.memory_space<vmem>>, vector<1x8x8x8xbf16>,
    return
  }
  func.func @transform_0(%arg0: i32) -> (i32, i32, i32, i32, i32) {
    %c0_i32 = arith.constant 0 : i32
    %c0_i32_0 = arith.constant 0 : i32
    %c0_i32_1 = arith.constant 0 : i32
    %c0_i32_2 = arith.constant 0 : i32
    %c0_i32_3 = arith.constant 0 : i32
    return %arg0, %c0_i32, %c0_i32_0, %c0_i32_1, %c0_i32_2 : i32, i32, i32, i32, i32
  }
  func.func @transform_1(%arg0: i32) -> (i32, i32, i32) {
    %c0_i32 = arith.constant 0 : i32
    %c0_i32_0 = arith.constant 0 : i32
    %c0_i32_1 = arith.constant 0 : i32
    %c0_i32_2 = arith.constant 0 : i32
    return %c0_i32, %c0_i32_0, %c0_i32_1 : i32, i32, i32
  }
  func.func @transform_2(%arg0: i32) -> (i32, i32) {
    %c0_i32 = arith.constant 0 : i32
    %c0_i32_0 = arith.constant 0 : i32
    %c0_i32_1 = arith.constant 0 : i32
    return %c0_i32, %c0_i32_0 : i32, i32
  }
  func.func @transform_3(%arg0: i32) -> (i32, i32, i32, i32) {
    %c0_i32 = arith.constant 0 : i32
    %c0_i32_0 = arith.constant 0 : i32
    %c0_i32_1 = arith.constant 0 : i32
    %c0_i32_2 = arith.constant 0 : i32
    return %arg0, %c0_i32, %c0_i32_0, %c0_i32_1 : i32, i32, i32, i32
  }
}

</mosaic_0001>

<llo_original>
// kernel: tpu_custom_call.1
$region0: #{tpu_custom_call.1}
  #allocation0 [shape = 'u32[]', space=smem, size = 0x4, offset = 0x4, fixed_abs, tag = 'smem constant byte address 0x4 - core index']
  #allocation1 [shape = 'u32[72,128]{1,0:T(1,128)}', space=vmem, size = 0x9000, scoped, tag = 'internal scratch']
  %s0 = inlined_call_operand.vmem [shape: bf16[2,4,9,9,1], index: 0, kind: input, shape index: {}]
  %s1 = inlined_call_operand.vmem [shape: bf16[9,1,8], index: 1, kind: input, shape index: {}]
  %s2 = inlined_call_operand.vmem [shape: f32[1,8], index: 2, kind: input, shape index: {}]
  %s3 = inlined_call_operand.hbm [shape: bf16[2,8,8,8], index: 3, kind: output, shape index: {}]
  %s4 = sld [smem:[#allocation0]]
  $region45: #{tpu_custom_call.1} parent=0
    _
  %s6 = ssub.s32 1, %s4
  %s7 = scalar_select 0, %s6, %s4
  $region1: #{tpu_custom_call.1} parent=0
    #allocation2 [shape = 'u8[32768]{0}', space=vmem, size = 0x8000, scoped, tag = 'output window, operand 0']
    #allocation3 [shape = 's32[2]{0}', space=sflag, size = 0x8, scoped, tag = 'scoped memory for tpu_custom_call.1']
    %8 = vsyncpa [#allocation3], 0
    %s9 = scalar_lea.sflag [#allocation3], 1
    %10 = vsyncpa %s9, 0
    loop: start=0, step=1, limit=4
    $region2: #{tpu_custom_call.1} parent=1 // loop_pre_header
      _
    $region3: #{tpu_custom_call.1} parent=1 // loop_header
      %s12 = sphi 0, %s16
      %p13 = scmp.ge.s32.totalorder %s12, 4
      %s22 = sphi 0, %s24
      %s25 = sphi 0, %s22
      %s26 = sphi 0, %s25
      %s42 = sphi 0, %s26
      %s46 = sphi 0, %s46
      %s48 = sphi 0, %s46
      %s49 = sphi 0, %s48
      %s63 = sphi 0, %s49
      %s67 = sphi 0, %s67
      %s69 = sphi 0, %s67
      %s70 = sphi 0, %s69
      %s84 = sphi 0, %s70
      %s90 = sphi 0, %s92
      %s93 = sphi 0, %s90
      %s94 = sphi 0, %s93
      %s110 = sphi 0, %s94
    $region4: #{tpu_custom_call.1} parent=1 // loop_header_branch
      %15 = sbr.rel (%p13) target = $region8
    $region5: #{tpu_custom_call.1} parent=1 // loop_body
      %s17 = ssub.s32 %s12, 1
      %s18 = ssub.s32 %s12, 2
      %s19 = sadd.s32 %s12, 1
      %s20 = ssub.s32 %s12, %s19
      %p21 = scmp.eq.s32.totalorder %s20, 0
      %s23 = sadd.s32 %s22, 1
      %s24 = scalar_select %p21, %s22, %s23
      %p27 = pneg %p21
      %p28 = scmp.eq.s32.totalorder %s12, 1
      %p29 = por %p27, %p28
      %p30 = scmp.ne.s32.totalorder %s22, %s25
      %p31 = scmp.eq.s32.totalorder %s12, 0
      %p32 = por %p30, %p31
      %p33 = scmp.ne.s32.totalorder %s22, %s25
      %p34 = scmp.eq.s32.totalorder %s17, 1
      %p35 = por %p33, %p34
      %p36 = scmp.ne.s32.totalorder %s25, %s26
      %p37 = scmp.eq.s32.totalorder %s17, 0
      %p38 = por %p36, %p37
      %p39 = scmp.ne.s32.totalorder %s25, %s26
      %p40 = scmp.eq.s32.totalorder %s18, 1
      %p41 = por %p39, %p40
      %p43 = scmp.ne.s32.totalorder %s26, %s42
      %p44 = scmp.eq.s32.totalorder %s18, 0
      %p45 = por %p43, %p44
      %s47 = sadd.s32 %s46, 1
      %p50 = scmp.eq.s32.totalorder %s12, 1
      %p51 = scmp.ne.s32.totalorder %s46, %s48
      %p52 = scmp.eq.s32.totalorder %s12, 0
      %p53 = por %p51, %p52
      %p54 = scmp.ne.s32.totalorder %s46, %s48
      %p55 = scmp.eq.s32.totalorder %s17, 1
      %p56 = por %p54, %p55
      %p57 = scmp.ne.s32.totalorder %s48, %s49
      %p58 = scmp.eq.s32.totalorder %s17, 0
      %p59 = por %p57, %p58
      %p60 = scmp.ne.s32.totalorder %s48, %s49
      %p61 = scmp.eq.s32.totalorder %s18, 1
      %p62 = por %p60, %p61
      %p64 = scmp.ne.s32.totalorder %s49, %s63
      %p65 = scmp.eq.s32.totalorder %s18, 0
      %p66 = por %p64, %p65
      %s68 = sadd.s32 %s67, 1
      %p71 = scmp.eq.s32.totalorder %s12, 1
      %p72 = scmp.ne.s32.totalorder %s67, %s69
      %p73 = scmp.eq.s32.totalorder %s12, 0
      %p74 = por %p72, %p73
      %p75 = scmp.ne.s32.totalorder %s67, %s69
      %p76 = scmp.eq.s32.totalorder %s17, 1
      %p77 = por %p75, %p76
      %p78 = scmp.ne.s32.totalorder %s69, %s70
      %p79 = scmp.eq.s32.totalorder %s17, 0
      %p80 = por %p78, %p79
      %p81 = scmp.ne.s32.totalorder %s69, %s70
      %p82 = scmp.eq.s32.totalorder %s18, 1
      %p83 = por %p81, %p82
      %p85 = scmp.ne.s32.totalorder %s70, %s84
      %p86 = scmp.eq.s32.totalorder %s18, 0
      %p87 = por %p85, %p86
      %s88 = ssub.s32 %s12, %s19
      %p89 = scmp.eq.s32.totalorder %s88, 0
      %s91 = sadd.s32 %s90, 1
      %s92 = scalar_select %p89, %s90, %s91
      %p95 = pneg %p89
      %p96 = scmp.eq.s32.totalorder %s12, 1
      %p97 = por %p95, %p96
      %p98 = scmp.ne.s32.totalorder %s90, %s93
      %p99 = scmp.eq.s32.totalorder %s12, 0
      %p100 = por %p98, %p99
      %p101 = scmp.ne.s32.totalorder %s90, %s93
      %p102 = scmp.eq.s32.totalorder %s17, 1
      %p103 = por %p101, %p102
      %p104 = scmp.ne.s32.totalorder %s93, %s94
      %p105 = scmp.eq.s32.totalorder %s17, 0
      %p106 = por %p104, %p105
      %p107 = scmp.ne.s32.totalorder %s93, %s94
      %p108 = scmp.eq.s32.totalorder %s18, 1
      %p109 = por %p107, %p108
      %p111 = scmp.ne.s32.totalorder %s94, %s110
      %p112 = scmp.eq.s32.totalorder %s18, 0
      %p113 = por %p111, %p112
      %p114 = scmp.le.s32.totalorder 1, %s12
      %p115 = scmp.lt.s32.totalorder %s12, 3
      %p116 = pnand %p114, %p115
      %p117 = pneg %p116
      // Predicated region
      $region9: #{tpu_custom_call.1} parent=5 // pred_check
        _
      $region10: #{tpu_custom_call.1} parent=5 // pred_check_branch
        %119 = sbr.rel (%p116) target = $region12
      $region11: #{tpu_custom_call.1} parent=5 // pred_region
        %s120 = ssub.s32 %s12, 1
        // Predicated region
        $region13: #{tpu_custom_call.1} parent=11 // pred_check
          %p121 = pneg %p59
        $region14: #{tpu_custom_call.1} parent=11 // pred_check_branch
          %123 = sbr.rel (%p121) target = $region16
        $region15: #{tpu_custom_call.1} parent=11 // pred_region
          _
        $region16: #{tpu_custom_call.1} parent=11 // pred_fallthru
          _
        // Predicated region
        $region17: #{tpu_custom_call.1} parent=11 // pred_check
          %p124 = pneg %p80
        $region18: #{tpu_custom_call.1} parent=11 // pred_check_branch
          %126 = sbr.rel (%p124) target = $region20
        $region19: #{tpu_custom_call.1} parent=11 // pred_region
          _
        $region20: #{tpu_custom_call.1} parent=11 // pred_fallthru
          _
      $region12: #{tpu_custom_call.1} parent=5 // pred_fallthru
        _
      %p127 = scmp.lt.s32.totalorder %s12, 2
      // Predicated region
      $region21: #{tpu_custom_call.1} parent=5 // pred_check
        %p128 = pneg %p127
      $region22: #{tpu_custom_call.1} parent=5 // pred_check_branch
        %130 = sbr.rel (%p128) target = $region24
      $region23: #{tpu_custom_call.1} parent=5 // pred_region
        // Predicated region
        $region25: #{tpu_custom_call.1} parent=23 // pred_check
          %p131 = pneg %p32
        $region26: #{tpu_custom_call.1} parent=23 // pred_check_branch
          %133 = sbr.rel (%p131) target = $region28
        $region27: #{tpu_custom_call.1} parent=23 // pred_region
          %p134 = scmp.lt.s32.totalorder %s12, 1
          %s135 = scalar_select %p134, %s12, 1
          %s136 = smul.addr %s135, 72
          %s137 = smul.addr %s136, 4
          %s138 = scalar_lea.vmem %s0, %s137
        $region28: #{tpu_custom_call.1} parent=23 // pred_fallthru
          _
      $region24: #{tpu_custom_call.1} parent=5 // pred_fallthru
        _
      %p139 = scmp.le.s32.totalorder 1, %s12
      %p140 = scmp.lt.s32.totalorder %s12, 3
      %p141 = pnand %p139, %p140
      %p142 = pneg %p141
      // Predicated region
      $region29: #{tpu_custom_call.1} parent=5 // pred_check
        _
      $region30: #{tpu_custom_call.1} parent=5 // pred_check_branch
        %144 = sbr.rel (%p141) target = $region32
      $region31: #{tpu_custom_call.1} parent=5 // pred_region
        %s145 = ssub.s32 %s12, 1
        %p146 = scmp.lt.s32.totalorder %s17, 1
        %s147 = scalar_select %p146, %s17, 1
        %s148 = smul.addr %s147, 72
        %s149 = smul.addr %s148, 4
        %s150 = scalar_lea.vmem %s0, %s149
        %p151 = pneg %p38
        %p152 = pneg %p35
        %p153 = pneg %p59
        %p154 = pneg %p56
        %p155 = pneg %p80
        %p156 = pneg %p77
        %p157 = pneg %p106
        %p158 = pneg %p103
        %s159 = sand.u32 %s93, 1
        %s160 = scalar_lea.sflag [#allocation3], %s159
        %s161 = sand.u32 %s93, 1
        %s162 = smul.addr %s161, 32
        %s163 = scalar_lea.vmem [#allocation2], %s162
        %p164 = scmp.lt.s32.totalorder %s17, 1
        %s165 = scalar_select %p164, %s17, 1
        %s166 = smul.addr %s165, 72
        %s167 = smul.addr %s166, 4
        %s168 = scalar_lea.vmem %s0, %s167
        %v169 = vld [vmem:[%s168] sm:$0xf]
        %v170 = vld [vmem:[%s168 + $0x4] sm:$0x1]
        %v171 = vld [vmem:[%s168 + $0x8] sm:$0xf]
        %v172 = vld [vmem:[%s168 + $0xc] sm:$0x1]
        %v173 = vld [vmem:[%s168 + $0x10] sm:$0xf]
        %v174 = vld [vmem:[%s168 + $0x14] sm:$0x1]
        %v175 = vld [vmem:[%s168 + $0x18] sm:$0xf]
        %v176 = vld [vmem:[%s168 + $0x1c] sm:$0x1]
        %v177 = vld [vmem:[%s168 + $0x20] sm:$0xf]
        %v178 = vld [vmem:[%s168 + $0x24] sm:$0x1]
        %v179 = vld [vmem:[%s168 + $0x28] sm:$0xf]
        %v180 = vld [vmem:[%s168 + $0x2c] sm:$0x1]
        %v181 = vld [vmem:[%s168 + $0x30] sm:$0xf]
        %v182 = vld [vmem:[%s168 + $0x34] sm:$0x1]
        %v183 = vld [vmem:[%s168 + $0x38] sm:$0xf]
        %v184 = vld [vmem:[%s168 + $0x3c] sm:$0x1]
        %v185 = vld [vmem:[%s168 + $0x40] sm:$0xf]
        %v186 = vld [vmem:[%s168 + $0x44] sm:$0x1]
        %s187 = scalar_lea.vmem %s168, 72
        %v188 = vld [vmem:[%s187] sm:$0xf]
        %v189 = vld [vmem:[%s187 + $0x8] sm:$0xf]
        %v190 = vld [vmem:[%s187 + $0x10] sm:$0xf]
        %v191 = vld [vmem:[%s187 + $0x18] sm:$0xf]
        %v192 = vld [vmem:[%s187 + $0x20] sm:$0xf]
        %v193 = vld [vmem:[%s187 + $0x28] sm:$0xf]
        %v194 = vld [vmem:[%s187 + $0x30] sm:$0xf]
        %v195 = vld [vmem:[%s187 + $0x38] sm:$0xf]
        %v196 = vld [vmem:[%s187 + $0x40] sm:$0xf]
        %s197 = scalar_lea.vmem %s168, 144
        %v198 = vld [vmem:[%s197] sm:$0xf]
        %v199 = vld [vmem:[%s197 + $0x4] sm:$0x1]
        %v200 = vld [vmem:[%s197 + $0x8] sm:$0xf]
        %v201 = vld [vmem:[%s197 + $0xc] sm:$0x1]
        %v202 = vld [vmem:[%s197 + $0x10] sm:$0xf]
        %v203 = vld [vmem:[%s197 + $0x14] sm:$0x1]
        %v204 = vld [vmem:[%s197 + $0x18] sm:$0xf]
        %v205 = vld [vmem:[%s197 + $0x1c] sm:$0x1]
        %v206 = vld [vmem:[%s197 + $0x20] sm:$0xf]
        %v207 = vld [vmem:[%s197 + $0x24] sm:$0x1]
        %v208 = vld [vmem:[%s197 + $0x28] sm:$0xf]
        %v209 = vld [vmem:[%s197 + $0x2c] sm:$0x1]
        %v210 = vld [vmem:[%s197 + $0x30] sm:$0xf]
        %v211 = vld [vmem:[%s197 + $0x34] sm:$0x1]
        %v212 = vld [vmem:[%s197 + $0x38] sm:$0xf]
        %v213 = vld [vmem:[%s197 + $0x3c] sm:$0x1]
        %s214 = scalar_lea.vmem %s168, 216
        %v215 = vld [vmem:[%s214] sm:$0xf]
        %v216 = vld [vmem:[%s214 + $0x8] sm:$0xf]
        %v217 = vld [vmem:[%s214 + $0x10] sm:$0xf]
        %v218 = vld [vmem:[%s214 + $0x18] sm:$0xf]
        %v219 = vld [vmem:[%s214 + $0x20] sm:$0xf]
        %v220 = vld [vmem:[%s214 + $0x28] sm:$0xf]
        %v221 = vld [vmem:[%s214 + $0x30] sm:$0xf]
        %v222 = vld [vmem:[%s214 + $0x38] sm:$0xf]
        %v223 = vld [vmem:[%s1] sm:$0x1]
        %v224 = vunpack.c.l.bf16 %v169
        %v225 = vunpack.c.l.bf16 %v171
        %v226 = vunpack.c.l.bf16 %v173
        %v227 = vunpack.c.l.bf16 %v175
        %v228 = vunpack.c.l.bf16 %v177
        %v229 = vunpack.c.l.bf16 %v179
        %v230 = vunpack.c.l.bf16 %v181
        %v231 = vunpack.c.l.bf16 %v183
        %v232 = vunpack.c.l.bf16 %v223
        %234 = vset.pattern.permute.xlu0 0
        %235 = vperm.xlu0 %234, %v224
        %v236 = vpop.permute.xlu0 %235
        %239 = vset.pattern.permute.xlu0 0
        %240 = vperm.xlu0 %239, %v225
        %v241 = vpop.permute.xlu0 %240
        %244 = vset.pattern.permute.xlu0 0
        %245 = vperm.xlu0 %244, %v226
        %v246 = vpop.permute.xlu0 %245
        %249 = vset.pattern.permute.xlu0 0
        %250 = vperm.xlu0 %249, %v227
        %v251 = vpop.permute.xlu0 %250
        %254 = vset.pattern.permute.xlu0 0
        %255 = vperm.xlu0 %254, %v228
        %v256 = vpop.permute.xlu0 %255
        %259 = vset.pattern.permute.xlu0 0
        %260 = vperm.xlu0 %259, %v229
        %v261 = vpop.permute.xlu0 %260
        %264 = vset.pattern.permute.xlu0 0
        %265 = vperm.xlu0 %264, %v230
        %v266 = vpop.permute.xlu0 %265
        %269 = vset.pattern.permute.xlu0 0
        %270 = vperm.xlu0 %269, %v231
        %v271 = vpop.permute.xlu0 %270
        %v273 = vperm.slane %v232, 0
        %v274 = vmul.f32 %v236, %v273
        %v275 = vmul.f32 %v241, %v273
        %v276 = vmul.f32 %v246, %v273
        %v277 = vmul.f32 %v251, %v273
        %v278 = vmul.f32 %v256, %v273
        %v279 = vmul.f32 %v261, %v273
        %v280 = vmul.f32 %v266, %v273
        %v281 = vmul.f32 %v271, %v273
        %v282 = vadd.f32 %v274, 0.0
        %v283 = vadd.f32 %v275, 0.0
        %v284 = vadd.f32 %v276, 0.0
        %v285 = vadd.f32 %v277, 0.0
        %v286 = vadd.f32 %v278, 0.0
        %v287 = vadd.f32 %v279, 0.0
        %v288 = vadd.f32 %v280, 0.0
        %v289 = vadd.f32 %v281, 0.0
        %s290 = scalar_lea.vmem %s1, 1
        %v291 = vld [vmem:[%s290] sm:$0x1]
        %v292 = vunpack.c.l.bf16 %v188
        %v293 = vunpack.c.l.bf16 %v189
        %v294 = vunpack.c.l.bf16 %v190
        %v295 = vunpack.c.l.bf16 %v191
        %v296 = vunpack.c.l.bf16 %v192
        %v297 = vunpack.c.l.bf16 %v193
        %v298 = vunpack.c.l.bf16 %v194
        %v299 = vunpack.c.l.bf16 %v195
        %v300 = vunpack.c.l.bf16 %v291
        %302 = vset.pattern.permute.xlu0 0
        %303 = vperm.xlu0 %302, %v292
        %v304 = vpop.permute.xlu0 %303
        %307 = vset.pattern.permute.xlu0 0
        %308 = vperm.xlu0 %307, %v293
        %v309 = vpop.permute.xlu0 %308
        %312 = vset.pattern.permute.xlu0 0
        %313 = vperm.xlu0 %312, %v294
        %v314 = vpop.permute.xlu0 %313
        %317 = vset.pattern.permute.xlu0 0
        %318 = vperm.xlu0 %317, %v295
        %v319 = vpop.permute.xlu0 %318
        %322 = vset.pattern.permute.xlu0 0
        %323 = vperm.xlu0 %322, %v296
        %v324 = vpop.permute.xlu0 %323
        %327 = vset.pattern.permute.xlu0 0
        %328 = vperm.xlu0 %327, %v297
        %v329 = vpop.permute.xlu0 %328
        %332 = vset.pattern.permute.xlu0 0
        %333 = vperm.xlu0 %332, %v298
        %v334 = vpop.permute.xlu0 %333
        %337 = vset.pattern.permute.xlu0 0
        %338 = vperm.xlu0 %337, %v299
        %v339 = vpop.permute.xlu0 %338
        %v341 = vperm.slane %v300, 0
        %v342 = vmul.f32 %v304, %v341
        %v343 = vmul.f32 %v309, %v341
        %v344 = vmul.f32 %v314, %v341
        %v345 = vmul.f32 %v319, %v341
        %v346 = vmul.f32 %v324, %v341
        %v347 = vmul.f32 %v329, %v341
        %v348 = vmul.f32 %v334, %v341
        %v349 = vmul.f32 %v339, %v341
        %v350 = vadd.f32 %v282, %v342
        %v351 = vadd.f32 %v283, %v343
        %v352 = vadd.f32 %v284, %v344
        %v353 = vadd.f32 %v285, %v345
        %v354 = vadd.f32 %v286, %v346
        %v355 = vadd.f32 %v287, %v347
        %v356 = vadd.f32 %v288, %v348
        %v357 = vadd.f32 %v289, %v349
        %vm358 = vsmask.f32 3328
        %vm359 = vsmask.f32 7440
        %vm360 = vmor %vm358, %vm359
        %v362 = vshrl.u32 %v169, 16
        %v364 = vrot.slane %v362, 4
        %v365 = vshll.u32 %v169, 16
        %v367 = vrot.slane %v365, 5
        %v368 = vor.u32 %v364, %v367
        %v369 = vrot.slane %v368, 4
        %v371 = vshll.u32 %v170, 16
        %v373 = vrot.slane %v371, 5
        %v374 = vsel %vm360, %v369, %v373
        %v376 = vshrl.u32 %v171, 16
        %v378 = vrot.slane %v376, 4
        %v379 = vshll.u32 %v171, 16
        %v381 = vrot.slane %v379, 5
        %v382 = vor.u32 %v378, %v381
        %v383 = vrot.slane %v382, 4
        %v385 = vshll.u32 %v172, 16
        %v387 = vrot.slane %v385, 5
        %v388 = vsel %vm360, %v383, %v387
        %v390 = vshrl.u32 %v173, 16
        %v392 = vrot.slane %v390, 4
        %v393 = vshll.u32 %v173, 16
        %v395 = vrot.slane %v393, 5
        %v396 = vor.u32 %v392, %v395
        %v397 = vrot.slane %v396, 4
        %v399 = vshll.u32 %v174, 16
        %v401 = vrot.slane %v399, 5
        %v402 = vsel %vm360, %v397, %v401
        %v404 = vshrl.u32 %v175, 16
        %v406 = vrot.slane %v404, 4
        %v407 = vshll.u32 %v175, 16
        %v409 = vrot.slane %v407, 5
        %v410 = vor.u32 %v406, %v409
        %v411 = vrot.slane %v410, 4
        %v413 = vshll.u32 %v176, 16
        %v415 = vrot.slane %v413, 5
        %v416 = vsel %vm360, %v411, %v415
        %v418 = vshrl.u32 %v177, 16
        %v420 = vrot.slane %v418, 4
        %v421 = vshll.u32 %v177, 16
        %v423 = vrot.slane %v421, 5
        %v424 = vor.u32 %v420, %v423
        %v425 = vrot.slane %v424, 4
        %v427 = vshll.u32 %v178, 16
        %v429 = vrot.slane %v427, 5
        %v430 = vsel %vm360, %v425, %v429
        %v432 = vshrl.u32 %v179, 16
        %v434 = vrot.slane %v432, 4
        %v435 = vshll.u32 %v179, 16
        %v437 = vrot.slane %v435, 5
        %v438 = vor.u32 %v434, %v437
        %v439 = vrot.slane %v438, 4
        %v441 = vshll.u32 %v180, 16
        %v443 = vrot.slane %v441, 5
        %v444 = vsel %vm360, %v439, %v443
        %v446 = vshrl.u32 %v181, 16
        %v448 = vrot.slane %v446, 4
        %v449 = vshll.u32 %v181, 16
        %v451 = vrot.slane %v449, 5
        %v452 = vor.u32 %v448, %v451
        %v453 = vrot.slane %v452, 4
        %v455 = vshll.u32 %v182, 16
        %v457 = vrot.slane %v455, 5
        %v458 = vsel %vm360, %v453, %v457
        %v460 = vshrl.u32 %v183, 16
        %v462 = vrot.slane %v460, 4
        %v463 = vshll.u32 %v183, 16
        %v465 = vrot.slane %v463, 5
        %v466 = vor.u32 %v462, %v465
        %v467 = vrot.slane %v466, 4
        %v469 = vshll.u32 %v184, 16
        %v471 = vrot.slane %v469, 5
        %v472 = vsel %vm360, %v467, %v471
        %s481 = scalar_lea.vmem %s1, 2
        %v482 = vld [vmem:[%s481] sm:$0x1]
        %v483 = vunpack.c.l.bf16 %v374
        %v484 = vunpack.c.l.bf16 %v388
        %v485 = vunpack.c.l.bf16 %v402
        %v486 = vunpack.c.l.bf16 %v416
        %v487 = vunpack.c.l.bf16 %v430
        %v488 = vunpack.c.l.bf16 %v444
        %v489 = vunpack.c.l.bf16 %v458
        %v490 = vunpack.c.l.bf16 %v472
        %v491 = vunpack.c.l.bf16 %v482
        %493 = vset.pattern.permute.xlu0 0
        %494 = vperm.xlu0 %493, %v483
        %v495 = vpop.permute.xlu0 %494
        %498 = vset.pattern.permute.xlu0 0
        %499 = vperm.xlu0 %498, %v484
        %v500 = vpop.permute.xlu0 %499
        %503 = vset.pattern.permute.xlu0 0
        %504 = vperm.xlu0 %503, %v485
        %v505 = vpop.permute.xlu0 %504
        %508 = vset.pattern.permute.xlu0 0
        %509 = vperm.xlu0 %508, %v486
        %v510 = vpop.permute.xlu0 %509
        %513 = vset.pattern.permute.xlu0 0
        %514 = vperm.xlu0 %513, %v487
        %v515 = vpop.permute.xlu0 %514
        %518 = vset.pattern.permute.xlu0 0
        %519 = vperm.xlu0 %518, %v488
        %v520 = vpop.permute.xlu0 %519
        %523 = vset.pattern.permute.xlu0 0
        %524 = vperm.xlu0 %523, %v489
        %v525 = vpop.permute.xlu0 %524
        %528 = vset.pattern.permute.xlu0 0
        %529 = vperm.xlu0 %528, %v490
        %v530 = vpop.permute.xlu0 %529
        %v532 = vperm.slane %v491, 0
        %v533 = vmul.f32 %v495, %v532
        %v534 = vmul.f32 %v500, %v532
        %v535 = vmul.f32 %v505, %v532
        %v536 = vmul.f32 %v510, %v532
        %v537 = vmul.f32 %v515, %v532
        %v538 = vmul.f32 %v520, %v532
        %v539 = vmul.f32 %v525, %v532
        %v540 = vmul.f32 %v530, %v532
        %v541 = vadd.f32 %v350, %v533
        %v542 = vadd.f32 %v351, %v534
        %v543 = vadd.f32 %v352, %v535
        %v544 = vadd.f32 %v353, %v536
        %v545 = vadd.f32 %v354, %v537
        %v546 = vadd.f32 %v355, %v538
        %v547 = vadd.f32 %v356, %v539
        %v548 = vadd.f32 %v357, %v540
        %s549 = scalar_lea.vmem %s1, 3
        %v550 = vld [vmem:[%s549] sm:$0x1]
        %v551 = vunpack.c.l.bf16 %v198
        %v552 = vunpack.c.l.bf16 %v200
        %v553 = vunpack.c.l.bf16 %v202
        %v554 = vunpack.c.l.bf16 %v204
        %v555 = vunpack.c.l.bf16 %v206
        %v556 = vunpack.c.l.bf16 %v208
        %v557 = vunpack.c.l.bf16 %v210
        %v558 = vunpack.c.l.bf16 %v212
        %v559 = vunpack.c.l.bf16 %v550
        %561 = vset.pattern.permute.xlu0 0
        %562 = vperm.xlu0 %561, %v551
        %v563 = vpop.permute.xlu0 %562
        %566 = vset.pattern.permute.xlu0 0
        %567 = vperm.xlu0 %566, %v552
        %v568 = vpop.permute.xlu0 %567
        %571 = vset.pattern.permute.xlu0 0
        %572 = vperm.xlu0 %571, %v553
        %v573 = vpop.permute.xlu0 %572
        %576 = vset.pattern.permute.xlu0 0
        %577 = vperm.xlu0 %576, %v554
        %v578 = vpop.permute.xlu0 %577
        %581 = vset.pattern.permute.xlu0 0
        %582 = vperm.xlu0 %581, %v555
        %v583 = vpop.permute.xlu0 %582
        %586 = vset.pattern.permute.xlu0 0
        %587 = vperm.xlu0 %586, %v556
        %v588 = vpop.permute.xlu0 %587
        %591 = vset.pattern.permute.xlu0 0
        %592 = vperm.xlu0 %591, %v557
        %v593 = vpop.permute.xlu0 %592
        %596 = vset.pattern.permute.xlu0 0
        %597 = vperm.xlu0 %596, %v558
        %v598 = vpop.permute.xlu0 %597
        %v600 = vperm.slane %v559, 0
        %v601 = vmul.f32 %v563, %v600
        %v602 = vmul.f32 %v568, %v600
        %v603 = vmul.f32 %v573, %v600
        %v604 = vmul.f32 %v578, %v600
        %v605 = vmul.f32 %v583, %v600
        %v606 = vmul.f32 %v588, %v600
        %v607 = vmul.f32 %v593, %v600
        %v608 = vmul.f32 %v598, %v600
        %v609 = vadd.f32 %v541, %v601
        %v610 = vadd.f32 %v542, %v602
        %v611 = vadd.f32 %v543, %v603
        %v612 = vadd.f32 %v544, %v604
        %v613 = vadd.f32 %v545, %v605
        %v614 = vadd.f32 %v546, %v606
        %v615 = vadd.f32 %v547, %v607
        %v616 = vadd.f32 %v548, %v608
        %s617 = scalar_lea.vmem %s1, 4
        %v618 = vld [vmem:[%s617] sm:$0x1]
        %v619 = vunpack.c.l.bf16 %v215
        %v620 = vunpack.c.l.bf16 %v216
        %v621 = vunpack.c.l.bf16 %v217
        %v622 = vunpack.c.l.bf16 %v218
        %v623 = vunpack.c.l.bf16 %v219
        %v624 = vunpack.c.l.bf16 %v220
        %v625 = vunpack.c.l.bf16 %v221
        %v626 = vunpack.c.l.bf16 %v222
        %v627 = vunpack.c.l.bf16 %v618
        %629 = vset.pattern.permute.xlu0 0
        %630 = vperm.xlu0 %629, %v619
        %v631 = vpop.permute.xlu0 %630
        %634 = vset.pattern.permute.xlu0 0
        %635 = vperm.xlu0 %634, %v620
        %v636 = vpop.permute.xlu0 %635
        %639 = vset.pattern.permute.xlu0 0
        %640 = vperm.xlu0 %639, %v621
        %v641 = vpop.permute.xlu0 %640
        %644 = vset.pattern.permute.xlu0 0
        %645 = vperm.xlu0 %644, %v622
        %v646 = vpop.permute.xlu0 %645
        %649 = vset.pattern.permute.xlu0 0
        %650 = vperm.xlu0 %649, %v623
        %v651 = vpop.permute.xlu0 %650
        %654 = vset.pattern.permute.xlu0 0
        %655 = vperm.xlu0 %654, %v624
        %v656 = vpop.permute.xlu0 %655
        %659 = vset.pattern.permute.xlu0 0
        %660 = vperm.xlu0 %659, %v625
        %v661 = vpop.permute.xlu0 %660
        %664 = vset.pattern.permute.xlu0 0
        %665 = vperm.xlu0 %664, %v626
        %v666 = vpop.permute.xlu0 %665
        %v668 = vperm.slane %v627, 0
        %v669 = vmul.f32 %v631, %v668
        %v670 = vmul.f32 %v636, %v668
        %v671 = vmul.f32 %v641, %v668
        %v672 = vmul.f32 %v646, %v668
        %v673 = vmul.f32 %v651, %v668
        %v674 = vmul.f32 %v656, %v668
        %v675 = vmul.f32 %v661, %v668
        %v676 = vmul.f32 %v666, %v668
        %v677 = vadd.f32 %v609, %v669
        %v678 = vadd.f32 %v610, %v670
        %v679 = vadd.f32 %v611, %v671
        %v680 = vadd.f32 %v612, %v672
        %v681 = vadd.f32 %v613, %v673
        %v682 = vadd.f32 %v614, %v674
        %v683 = vadd.f32 %v615, %v675
        %v684 = vadd.f32 %v616, %v676
        %v686 = vshrl.u32 %v198, 16
        %v688 = vrot.slane %v686, 4
        %v689 = vshll.u32 %v198, 16
        %v691 = vrot.slane %v689, 5
        %v692 = vor.u32 %v688, %v691
        %v693 = vrot.slane %v692, 4
        %v695 = vshll.u32 %v199, 16
        %v697 = vrot.slane %v695, 5
        %v698 = vsel %vm360, %v693, %v697
        %v700 = vshrl.u32 %v200, 16
        %v702 = vrot.slane %v700, 4
        %v703 = vshll.u32 %v200, 16
        %v705 = vrot.slane %v703, 5
        %v706 = vor.u32 %v702, %v705
        %v707 = vrot.slane %v706, 4
        %v709 = vshll.u32 %v201, 16
        %v711 = vrot.slane %v709, 5
        %v712 = vsel %vm360, %v707, %v711
        %v714 = vshrl.u32 %v202, 16
        %v716 = vrot.slane %v714, 4
        %v717 = vshll.u32 %v202, 16
        %v719 = vrot.slane %v717, 5
        %v720 = vor.u32 %v716, %v719
        %v721 = vrot.slane %v720, 4
        %v723 = vshll.u32 %v203, 16
        %v725 = vrot.slane %v723, 5
        %v726 = vsel %vm360, %v721, %v725
        %v728 = vshrl.u32 %v204, 16
        %v730 = vrot.slane %v728, 4
        %v731 = vshll.u32 %v204, 16
        %v733 = vrot.slane %v731, 5
        %v734 = vor.u32 %v730, %v733
        %v735 = vrot.slane %v734, 4
        %v737 = vshll.u32 %v205, 16
        %v739 = vrot.slane %v737, 5
        %v740 = vsel %vm360, %v735, %v739
        %v742 = vshrl.u32 %v206, 16
        %v744 = vrot.slane %v742, 4
        %v745 = vshll.u32 %v206, 16
        %v747 = vrot.slane %v745, 5
        %v748 = vor.u32 %v744, %v747
        %v749 = vrot.slane %v748, 4
        %v751 = vshll.u32 %v207, 16
        %v753 = vrot.slane %v751, 5
        %v754 = vsel %vm360, %v749, %v753
        %v756 = vshrl.u32 %v208, 16
        %v758 = vrot.slane %v756, 4
        %v759 = vshll.u32 %v208, 16
        %v761 = vrot.slane %v759, 5
        %v762 = vor.u32 %v758, %v761
        %v763 = vrot.slane %v762, 4
        %v765 = vshll.u32 %v209, 16
        %v767 = vrot.slane %v765, 5
        %v768 = vsel %vm360, %v763, %v767
        %v770 = vshrl.u32 %v210, 16
        %v772 = vrot.slane %v770, 4
        %v773 = vshll.u32 %v210, 16
        %v775 = vrot.slane %v773, 5
        %v776 = vor.u32 %v772, %v775
        %v777 = vrot.slane %v776, 4
        %v779 = vshll.u32 %v211, 16
        %v781 = vrot.slane %v779, 5
        %v782 = vsel %vm360, %v777, %v781
        %v784 = vshrl.u32 %v212, 16
        %v786 = vrot.slane %v784, 4
        %v787 = vshll.u32 %v212, 16
        %v789 = vrot.slane %v787, 5
        %v790 = vor.u32 %v786, %v789
        %v791 = vrot.slane %v790, 4
        %v793 = vshll.u32 %v213, 16
        %v795 = vrot.slane %v793, 5
        %v796 = vsel %vm360, %v791, %v795
        %s805 = scalar_lea.vmem %s1, 5
        %v806 = vld [vmem:[%s805] sm:$0x1]
        %v807 = vunpack.c.l.bf16 %v698
        %v808 = vunpack.c.l.bf16 %v712
        %v809 = vunpack.c.l.bf16 %v726
        %v810 = vunpack.c.l.bf16 %v740
        %v811 = vunpack.c.l.bf16 %v754
        %v812 = vunpack.c.l.bf16 %v768
        %v813 = vunpack.c.l.bf16 %v782
        %v814 = vunpack.c.l.bf16 %v796
        %v815 = vunpack.c.l.bf16 %v806
        %817 = vset.pattern.permute.xlu0 0
        %818 = vperm.xlu0 %817, %v807
        %v819 = vpop.permute.xlu0 %818
        %822 = vset.pattern.permute.xlu0 0
        %823 = vperm.xlu0 %822, %v808
        %v824 = vpop.permute.xlu0 %823
        %827 = vset.pattern.permute.xlu0 0
        %828 = vperm.xlu0 %827, %v809
        %v829 = vpop.permute.xlu0 %828
        %832 = vset.pattern.permute.xlu0 0
        %833 = vperm.xlu0 %832, %v810
        %v834 = vpop.permute.xlu0 %833
        %837 = vset.pattern.permute.xlu0 0
        %838 = vperm.xlu0 %837, %v811
        %v839 = vpop.permute.xlu0 %838
        %842 = vset.pattern.permute.xlu0 0
        %843 = vperm.xlu0 %842, %v812
        %v844 = vpop.permute.xlu0 %843
        %847 = vset.pattern.permute.xlu0 0
        %848 = vperm.xlu0 %847, %v813
        %v849 = vpop.permute.xlu0 %848
        %852 = vset.pattern.permute.xlu0 0
        %853 = vperm.xlu0 %852, %v814
        %v854 = vpop.permute.xlu0 %853
        %v856 = vperm.slane %v815, 0
        %v857 = vmul.f32 %v819, %v856
        %v858 = vmul.f32 %v824, %v856
        %v859 = vmul.f32 %v829, %v856
        %v860 = vmul.f32 %v834, %v856
        %v861 = vmul.f32 %v839, %v856
        %v862 = vmul.f32 %v844, %v856
        %v863 = vmul.f32 %v849, %v856
        %v864 = vmul.f32 %v854, %v856
        %v865 = vadd.f32 %v677, %v857
        %v866 = vadd.f32 %v678, %v858
        %v867 = vadd.f32 %v679, %v859
        %v868 = vadd.f32 %v680, %v860
        %v869 = vadd.f32 %v681, %v861
        %v870 = vadd.f32 %v682, %v862
        %v871 = vadd.f32 %v683, %v863
        %v872 = vadd.f32 %v684, %v864
        %s873 = scalar_lea.vmem %s1, 6
        %v874 = vld [vmem:[%s873] sm:$0x1]
        %v875 = vunpack.c.l.bf16 %v185
        %v876 = vunpack.c.l.bf16 %v874
        %878 = vset.pattern.permute.xlu0 0
        %879 = vperm.xlu0 %878, %v875
        %v880 = vpop.permute.xlu0 %879
        %v882 = vperm.slane %v876, 0
        %v883 = vmul.f32 %v241, %v882
        %v884 = vmul.f32 %v246, %v882
        %v885 = vmul.f32 %v251, %v882
        %v886 = vmul.f32 %v256, %v882
        %v887 = vmul.f32 %v261, %v882
        %v888 = vmul.f32 %v266, %v882
        %v889 = vmul.f32 %v271, %v882
        %v890 = vmul.f32 %v880, %v882
        %v891 = vadd.f32 %v865, %v883
        %v892 = vadd.f32 %v866, %v884
        %v893 = vadd.f32 %v867, %v885
        %v894 = vadd.f32 %v868, %v886
        %v895 = vadd.f32 %v869, %v887
        %v896 = vadd.f32 %v870, %v888
        %v897 = vadd.f32 %v871, %v889
        %v898 = vadd.f32 %v872, %v890
        %s899 = scalar_lea.vmem %s1, 7
        %v900 = vld [vmem:[%s899] sm:$0x1]
        %v901 = vunpack.c.l.bf16 %v196
        %v902 = vunpack.c.l.bf16 %v900
        %904 = vset.pattern.permute.xlu0 0
        %905 = vperm.xlu0 %904, %v901
        %v906 = vpop.permute.xlu0 %905
        %v908 = vperm.slane %v902, 0
        %v909 = vmul.f32 %v309, %v908
        %v910 = vmul.f32 %v314, %v908
        %v911 = vmul.f32 %v319, %v908
        %v912 = vmul.f32 %v324, %v908
        %v913 = vmul.f32 %v329, %v908
        %v914 = vmul.f32 %v334, %v908
        %v915 = vmul.f32 %v339, %v908
        %v916 = vmul.f32 %v906, %v908
        %v917 = vadd.f32 %v891, %v909
        %v918 = vadd.f32 %v892, %v910
        %v919 = vadd.f32 %v893, %v911
        %v920 = vadd.f32 %v894, %v912
        %v921 = vadd.f32 %v895, %v913
        %v922 = vadd.f32 %v896, %v914
        %v923 = vadd.f32 %v897, %v915
        %v924 = vadd.f32 %v898, %v916
        %v926 = vshrl.u32 %v185, 16
        %v928 = vrot.slane %v926, 4
        %v929 = vshll.u32 %v185, 16
        %v931 = vrot.slane %v929, 5
        %v932 = vor.u32 %v928, %v931
        %v933 = vrot.slane %v932, 4
        %v935 = vshll.u32 %v186, 16
        %v937 = vrot.slane %v935, 5
        %v938 = vsel %vm360, %v933, %v937
        %s940 = scalar_lea.vmem %s1, 8
        %v941 = vld [vmem:[%s940] sm:$0x1]
        %v942 = vunpack.c.l.bf16 %v938
        %v943 = vunpack.c.l.bf16 %v941
        %945 = vset.pattern.permute.xlu0 0
        %946 = vperm.xlu0 %945, %v942
        %v947 = vpop.permute.xlu0 %946
        %v949 = vperm.slane %v943, 0
        %v950 = vmul.f32 %v500, %v949
        %v951 = vmul.f32 %v505, %v949
        %v952 = vmul.f32 %v510, %v949
        %v953 = vmul.f32 %v515, %v949
        %v954 = vmul.f32 %v520, %v949
        %v955 = vmul.f32 %v525, %v949
        %v956 = vmul.f32 %v530, %v949
        %v957 = vmul.f32 %v947, %v949
        %v958 = vadd.f32 %v917, %v950
        %v959 = vadd.f32 %v918, %v951
        %v960 = vadd.f32 %v919, %v952
        %v961 = vadd.f32 %v920, %v953
        %v962 = vadd.f32 %v921, %v954
        %v963 = vadd.f32 %v922, %v955
        %v964 = vadd.f32 %v923, %v956
        %v965 = vadd.f32 %v924, %v957
        %v966 = vld [vmem:[%s2] sm:$0x1]
        %v968 = vperm.slane %v966, 0
        %v970 = vadd.f32 %v958, %v968
        %v971 = vadd.f32 %v959, %v968
        %v972 = vadd.f32 %v960, %v968
        %v973 = vadd.f32 %v961, %v968
        %v974 = vadd.f32 %v962, %v968
        %v975 = vadd.f32 %v963, %v968
        %v976 = vadd.f32 %v964, %v968
        %v977 = vadd.f32 %v965, %v968
        %v978 = vmax.f32 %v970, 0.0
        %v979 = vmax.f32 %v971, 0.0
        %v980 = vmax.f32 %v972, 0.0
        %v981 = vmax.f32 %v973, 0.0
        %v982 = vmax.f32 %v974, 0.0
        %v983 = vmax.f32 %v975, 0.0
        %v984 = vmax.f32 %v976, 0.0
        %v985 = vmax.f32 %v977, 0.0
        %v986 = vpack.c.bf16 %v978, %v978
        %v987 = vpack.c.bf16 %v979, %v979
        %v988 = vpack.c.bf16 %v980, %v980
        %v989 = vpack.c.bf16 %v981, %v981
        %v990 = vpack.c.bf16 %v982, %v982
        %v991 = vpack.c.bf16 %v983, %v983
        %v992 = vpack.c.bf16 %v984, %v984
        %v993 = vpack.c.bf16 %v985, %v985
        %vm994 = vcmask 60416
        %995 = vst.msk [vmem:[%s163] sm:$0xf] %vm994, %v986
        %996 = vst.msk [vmem:[%s163 + $0x4] sm:$0xf] %vm994, %v987
        %997 = vst.msk [vmem:[%s163 + $0x8] sm:$0xf] %vm994, %v988
        %998 = vst.msk [vmem:[%s163 + $0xc] sm:$0xf] %vm994, %v989
        %999 = vst.msk [vmem:[%s163 + $0x10] sm:$0xf] %vm994, %v990
        %1000 = vst.msk [vmem:[%s163 + $0x14] sm:$0xf] %vm994, %v991
        %1001 = vst.msk [vmem:[%s163 + $0x18] sm:$0xf] %vm994, %v992
        %1002 = vst.msk [vmem:[%s163 + $0x1c] sm:$0xf] %vm994, %v993
        %s1003 = sand.u32 %s93, 1
        %s1004 = scalar_lea.sflag [#allocation3], %s1003
        %s1005 = sand.u32 %s93, 1
        %s1006 = smul.addr %s1005, 32
        %s1007 = scalar_lea.vmem [#allocation2], %s1006
        // Predicated region
        $region33: #{tpu_custom_call.1} parent=31 // pred_check
          %p1008 = pneg %p103
        $region34: #{tpu_custom_call.1} parent=31 // pred_check_branch
          %1010 = sbr.rel (%p1008) target = $region36
        $region35: #{tpu_custom_call.1} parent=31 // pred_region
          %1012 = vsyncadd %s1004, 0
          %s1013 = smul.addr %s17, 8
          %s1014 = smul.addr %s1013, 4
          %s1015 = scalar_lea.hbm %s3, %s1014
          %s1016 = sshll.u32 %s1007, 4
          %s1017 = int_to_ptr.vmem [resolvable:$true] %s1016
          %s1018 = sshll.u32 %s1015, 4
          %s1019 = int_to_ptr.hbm [resolvable:$true] %s1018
          %1024 = dma.vmem_to_hbm [thread:$0]  %s1017, 512, %s1019, %s1004, 64, 64, 4
        $region36: #{tpu_custom_call.1} parent=31 // pred_fallthru
          _
      $region32: #{tpu_custom_call.1} parent=5 // pred_fallthru
        _
      %p1025 = scmp.le.s32.totalorder 2, %s12
      // Predicated region
      $region37: #{tpu_custom_call.1} parent=5 // pred_check
        %p1026 = pneg %p1025
      $region38: #{tpu_custom_call.1} parent=5 // pred_check_branch
        %1028 = sbr.rel (%p1026) target = $region40
      $region39: #{tpu_custom_call.1} parent=5 // pred_region
        %s1029 = ssub.s32 %s12, 2
        // Predicated region
        $region41: #{tpu_custom_call.1} parent=39 // pred_check
          %p1030 = pneg %p109
        $region42: #{tpu_custom_call.1} parent=39 // pred_check_branch
          %1032 = sbr.rel (%p1030) target = $region44
        $region43: #{tpu_custom_call.1} parent=39 // pred_region
          %s1033 = sand.u32 %s94, 1
          %s1034 = scalar_lea.sflag [#allocation3], %s1033
          %s1035 = sand.u32 %s94, 1
          %s1036 = smul.addr %s1035, 32
          %s1037 = scalar_lea.vmem [#allocation2], %s1036
          %1039 = dma.done %s1034, 512
        $region44: #{tpu_custom_call.1} parent=39 // pred_fallthru
          _
      $region40: #{tpu_custom_call.1} parent=5 // pred_fallthru
        _
    $region6: #{tpu_custom_call.1} parent=1 // loop_footer
      %s16 = sadd.s32 1, %s12
    $region7: #{tpu_custom_call.1} parent=1 // loop_footer_branch
      %11 = sbr.rel target = $region3
    $region8: #{tpu_custom_call.1} parent=1 // loop_exit
      _
    %1040 = vsyncpa [#allocation3], 1
    %s1041 = scalar_lea.sflag [#allocation3], 1
    %1042 = vsyncpa %s1041, 1

</llo_original>
